<compile_context>
chip_gen: v7x
topology: tpu7x:2x2x1
jax: 0.10.0
libtpu: 0.0.40
codegen_flags: <defaults>
</compile_context>

<pallas_src>
import functools

import jax
import jax.numpy as jnp
from jax import lax
from jax.experimental import pallas as pl
from jax.experimental.pallas import tpu as pltpu


# ----------------------------------------------------------------------------
# Small helpers
# ----------------------------------------------------------------------------

def _round_up(n, m):
    return ((n + m - 1) // m) * m


def _query_vmem_capacity_bytes():
    """Generation-aware VMEM capacity (v5e/v6e: 128 MiB, v7x: 64 MiB per TC)."""
    try:
        info = pltpu.get_tpu_info()
        cap = int(getattr(info, "vmem_capacity_bytes", 0) or 0)
        if cap > 0:
            return cap
    except Exception:
        pass
    return 64 * 1024 * 1024          # conservative default == v7x per-TC VMEM


_VMEM_CAP = _query_vmem_capacity_bytes()


def _vmem_limit(needed_bytes):
    """Requested scoped-VMEM limit, clamped to ~90% of physical capacity."""
    hi = _VMEM_CAP - _VMEM_CAP // 10
    return int(min(max(needed_bytes * 5 // 4, 32 * 1024 * 1024), hi))


def _resident_spec(block_shape, index_map):
    """Grid-invariant input: single-buffer it (no 'next block' ever needed)."""
    try:
        return pl.BlockSpec(block_shape, index_map, pipeline_mode=pl.Buffered(1))
    except Exception:
        # Older BlockSpec without pipeline_mode: fall back to default buffering.
        return pl.BlockSpec(block_shape, index_map)


def _pick_bm(batch, bm_max):
    """Batch tile: multiple of 8, balanced tiles, >=2 grid steps when possible."""
    b8 = _round_up(max(batch, 1), 8)
    if b8 <= 8:
        return 8
    n_steps = max(2, pl.cdiv(b8, bm_max))     # >=2 so both v7x TensorCores get work
    return int(min(bm_max, _round_up(pl.cdiv(b8, n_steps), 8)))


# ----------------------------------------------------------------------------
# VMEM budgets (include in-kernel temporaries, per perf review)
# ----------------------------------------------------------------------------

def _fused_vmem_need(bm, d, l8, pbytes, xbytes):
    return (
        2 * d * l8 * pbytes          # W_enc^T + W_dec^T, single-buffered
        + 8 * 128 * 4                # bias (padded VMEM tile)
        + 2 * bm * d * xbytes        # x tile, double-buffered
        + 2 * bm * d * xbytes        # decoded tile, double-buffered
        + 2 * 8 * 128 * 4            # psq tile, double-buffered
        + bm * d * (pbytes + 8)      # temps: x cast, f32 dec, f32 xf
        + bm * l8 * (4 + pbytes)     # enc f32 + enc cast
    )


def _enc_tiled_vmem_need(bm, dk, l8, pbytes, xbytes):
    return (
        2 * bm * dk * xbytes         # x chunk, double-buffered
        + 2 * dk * l8 * pbytes       # W_enc^T chunk, double-buffered
        + 8 * 128 * 4                # bias
        + 2 * bm * l8 * pbytes       # encoded tile out, double-buffered
        + 2 * 8 * 128 * 4            # psq
        + bm * l8 * 4                # f32 accumulator scratch
        + bm * dk * (pbytes + 8)     # temps: masked x / cast / f32 xf
        + dk * l8 * pbytes           # masked weight temp
    )


def _dec_tiled_vmem_need(bm, dk, l8, pbytes, xbytes):
    return (
        2 * bm * l8 * pbytes         # encoded tile, double-buffered
        + 2 * l8 * dk * pbytes       # W_dec^T chunk, double-buffered
        + 2 * bm * dk * xbytes       # decoded chunk out, double-buffered
        + bm * dk * 4                # f32 dec temp
    )


# ----------------------------------------------------------------------------
# Fused kernel (weights resident in VMEM): one pass over the batch
# ----------------------------------------------------------------------------

def _fused_kernel(x_ref, we_ref, be_ref, wd_ref, dec_ref, psq_ref, *, batch, bm):
    """One grid step processes a (bm, D) tile of the batch.

    x_ref   : (bm, D)   input gradients tile (native dtype; last tile may be ragged)
    we_ref  : (D, L8)   encoder weight, transposed, latent padded to mult-of-8
    be_ref  : (1, L8)   encoder bias (f32)
    wd_ref  : (L8, D)   decoder weight, transposed
    dec_ref : (bm, D)   decoded output tile
    psq_ref : (8, 128)  per-tile partial sum-of-squares (uniform broadcast)
    """
    x = x_ref[...]

    # Encoder: Linear + ReLU, operands in param dtype (bf16 by default), f32 acc.
    enc = jnp.dot(x.astype(we_ref.dtype), we_ref[...],
                  preferred_element_type=jnp.float32)
    enc = jnp.maximum(enc + be_ref[...], 0.0)                    # (bm, L8) f32

    # Decoder: Linear (no bias) + ReLU; cast activation to the weight dtype.
    dec = jnp.dot(enc.astype(wd_ref.dtype), wd_ref[...],
                  preferred_element_type=jnp.float32)
    dec_ref[...] = jnp.maximum(dec, 0.0).astype(dec_ref.dtype)   # (bm, D)

    # ||x||^2 partial; mask ragged batch rows (padding of the last partial tile
    # is stale VMEM data and must not contribute).
    xf = x.astype(jnp.float32)
    if batch % bm != 0:
        rows = pl.program_id(0) * bm + lax.broadcasted_iota(jnp.int32, (bm, 1), 0)
        xf = jnp.where(rows < batch, xf, 0.0)
    psq_ref[...] = jnp.broadcast_to(jnp.sum(xf * xf), psq_ref.shape)


@functools.partial(jax.jit, static_argnames=("bm",))
def _fused_call(x, we_t, be, wd_t, *, bm):
    B, D = x.shape
    _, L8 = we_t.shape
    grid0 = int(pl.cdiv(B, bm))
    pbytes = jnp.dtype(we_t.dtype).itemsize
    xbytes = jnp.dtype(x.dtype).itemsize
    need = _fused_vmem_need(bm, D, L8, pbytes, xbytes)

    kernel = functools.partial(_fused_kernel, batch=B, bm=bm)
    decoded, psq = pl.pallas_call(
        kernel,
        out_shape=(
            jax.ShapeDtypeStruct((B, D), x.dtype),
            jax.ShapeDtypeStruct((grid0 * 8, 128), jnp.float32),
        ),
        grid_spec=pltpu.PrefetchScalarGridSpec(
            num_scalar_prefetch=0,
            grid=(grid0,),
            in_specs=[
                pl.BlockSpec((bm, D), lambda i: (i, 0)),            # x tile
                _resident_spec((D, L8), lambda i: (0, 0)),          # W_enc^T
                _resident_spec((1, L8), lambda i: (0, 0)),          # b_enc
                _resident_spec((L8, D), lambda i: (0, 0)),          # W_dec^T
            ],
            out_specs=[
                pl.BlockSpec((bm, D), lambda i: (i, 0)),            # decoded tile
                pl.BlockSpec((8, 128), lambda i: (i, 0)),           # per-tile sumsq
            ],
        ),
        compiler_params=pltpu.CompilerParams(
            dimension_semantics=("parallel",),
            vmem_limit_bytes=_vmem_limit(need),
        ),
    )(x, we_t, be, wd_t)

    grad_norm = jnp.sqrt(jnp.sum(psq) * (1.0 / (8 * 128)))   # uniform blocks
    return decoded, grad_norm


# ----------------------------------------------------------------------------
# D-tiled two-pass path (weights streamed): scales to huge input_dim (v7x)
# ----------------------------------------------------------------------------

def _enc_tiled_kernel(x_ref, we_ref, be_ref, enc_ref, psq_ref, acc_ref,
                      *, batch, bm, d_total, dk):
    """K-reduction over D chunks: acc += x[:, chunk] @ W_enc^T[chunk, :]."""
    d = pl.program_id(1)

    @pl.when(d == 0)
    def _init():
        acc_ref[...] = jnp.zeros_like(acc_ref)
        psq_ref[...] = jnp.zeros_like(psq_ref)

    x = x_ref[...]
    w = we_ref[...]
    if d_total % dk != 0:
        # Ragged last D chunk: mask BOTH operands (the OOB region of a partial
        # block is stale VMEM data, so neither side can be trusted to be 0).
        cols = d * dk + lax.broadcasted_iota(jnp.int32, (1, dk), 1)
        x = jnp.where(cols < d_total, x, 0)
        rows_w = d * dk + lax.broadcasted_iota(jnp.int32, (dk, 1), 0)
        w = jnp.where(rows_w < d_total, w, 0)

    acc_ref[...] += jnp.dot(x.astype(w.dtype), w,
                            preferred_element_type=jnp.float32)

    # ||x||^2 accumulation (mask ragged batch rows).
    xf = x.astype(jnp.float32)
    if batch % bm != 0:
        rows = pl.program_id(0) * bm + lax.broadcasted_iota(jnp.int32, (bm, 1), 0)
        xf = jnp.where(rows < batch, xf, 0.0)
    psq_ref[...] += jnp.sum(xf * xf)

    @pl.when(d == pl.num_programs(1) - 1)
    def _finalize():
        enc_ref[...] = jnp.maximum(acc_ref[...] + be_ref[...],
                                   0.0).astype(enc_ref.dtype)


def _dec_tiled_kernel(enc_ref, wd_ref, dec_ref):
    """N-tiling over D chunks: dec[:, chunk] = relu(enc @ W_dec^T[:, chunk])."""
    dec = jnp.dot(enc_ref[...], wd_ref[...], preferred_element_type=jnp.float32)
    dec_ref[...] = jnp.maximum(dec, 0.0).astype(dec_ref.dtype)


@functools.partial(jax.jit, static_argnames=("bm", "dk"))
def _tiled_call(x, we_t, be, wd_t, *, bm, dk):
    B, D = x.shape
    _, L8 = we_t.shape
    nb = int(pl.cdiv(B, bm))
    nd = int(pl.cdiv(D, dk))
    pbytes = jnp.dtype(we_t.dtype).itemsize
    xbytes = jnp.dtype(x.dtype).itemsize

    # Pass 1: encoder (K-reduction over D chunks) + grad-norm partials.
    enc_kernel = functools.partial(_enc_tiled_kernel, batch=B, bm=bm,
                                   d_total=D, dk=dk)
    encoded, psq = pl.pallas_call(
        enc_kernel,
        out_shape=(
            jax.ShapeDtypeStruct((B, L8), we_t.dtype),
            jax.ShapeDtypeStruct((nb * 8, 128), jnp.float32),
        ),
        grid_spec=pltpu.PrefetchScalarGridSpec(
            num_scalar_prefetch=0,
            grid=(nb, nd),
            in_specs=[
                pl.BlockSpec((bm, dk), lambda i, d: (i, d)),        # x chunk
                pl.BlockSpec((dk, L8), lambda i, d: (d, 0)),        # W_enc^T chunk
                _resident_spec((1, L8), lambda i, d: (0, 0)),       # b_enc
            ],
            out_specs=[
                pl.BlockSpec((bm, L8), lambda i, d: (i, 0)),        # encoded (resident)
                pl.BlockSpec((8, 128), lambda i, d: (i, 0)),        # psq (resident)
            ],
            scratch_shapes=[pltpu.VMEM((bm, L8), jnp.float32)],
        ),
        compiler_params=pltpu.CompilerParams(
            dimension_semantics=("parallel", "arbitrary"),
            vmem_limit_bytes=_vmem_limit(
                _enc_tiled_vmem_need(bm, dk, L8, pbytes, xbytes)),
        ),
    )(x, we_t, be)

    # Pass 2: decoder (independent N tiles over D chunks).
    decoded = pl.pallas_call(
        _dec_tiled_kernel,
        out_shape=jax.ShapeDtypeStruct((B, D), x.dtype),
        grid_spec=pltpu.PrefetchScalarGridSpec(
            num_scalar_prefetch=0,
            grid=(nb, nd),
            in_specs=[
                pl.BlockSpec((bm, L8), lambda i, d: (i, 0)),        # encoded tile
                pl.BlockSpec((L8, dk), lambda i, d: (0, d)),        # W_dec^T chunk
            ],
            out_specs=pl.BlockSpec((bm, dk), lambda i, d: (i, d)),  # decoded chunk
        ),
        compiler_params=pltpu.CompilerParams(
            dimension_semantics=("parallel", "parallel"),
            vmem_limit_bytes=_vmem_limit(
                _dec_tiled_vmem_need(bm, dk, L8, pbytes, xbytes)),
        ),
    )(encoded, wd_t)

    grad_norm = jnp.sqrt(jnp.sum(psq) * (1.0 / (8 * 128)))
    return decoded, grad_norm


# ----------------------------------------------------------------------------
# Dispatcher + parameter preparation + model wrapper
# ----------------------------------------------------------------------------

def prepare_gradiend_params(w_enc, b_enc, w_dec, param_dtype=jnp.bfloat16):
    """Transpose weights; pad latent dim only to a multiple of 8. Do ONCE."""
    L, D = w_enc.shape
    L8 = _round_up(L, 8)
    we_t = jnp.zeros((D, L8), param_dtype).at[:, :L].set(
        w_enc.T.astype(param_dtype))
    be = jnp.zeros((1, L8), jnp.float32).at[0, :L].set(
        b_enc.astype(jnp.float32))
    wd_t = jnp.zeros((L8, D), param_dtype).at[:L, :].set(
        w_dec.T.astype(param_dtype))
    return we_t, be, wd_t


def gradiend_forward(x, we_t, be, wd_t, *, force_tiled=False, dk=None,
                     bm_max=None):
    """x: (B, D); we_t: (D, L8); be: (1, L8); wd_t: (L8, D).

    Returns (decoded (B, D), grad_norm scalar).
    """
    B, D = x.shape
    Dw, L8 = we_t.shape
    if Dw != D:
        raise ValueError(f"input_dim mismatch: x has {D}, weights have {Dw}")

    cap = _VMEM_CAP
    if bm_max is None:
        # v5e/v6e (>=128 MiB VMEM): bigger batch tiles; v7x (64 MiB): 256.
        bm_max = 512 if cap >= 96 * 1024 * 1024 else 256
    bm = _pick_bm(B, bm_max)
    pbytes = jnp.dtype(we_t.dtype).itemsize
    xbytes = jnp.dtype(x.dtype).itemsize

    # Prefer the fused single-kernel path; shrink the batch tile before giving
    # up on resident weights.
    if not force_tiled:
        bm_f = bm
        while bm_f > 8 and _fused_vmem_need(bm_f, D, L8, pbytes, xbytes) > (cap * 7) // 10:
            bm_f = max(8, _round_up(bm_f // 2, 8))
        if _fused_vmem_need(bm_f, D, L8, pbytes, xbytes) <= (cap * 7) // 10:
            return _fused_call(x, we_t, be, wd_t, bm=bm_f)

    # D-tiled two-pass path (weights streamed in dk-wide chunks).
    if dk is None:
        dk = 128
        for cand in (4096, 2048, 1024, 512, 256, 128):
            if cand > _round_up(D, 128):
                continue
            need = max(_enc_tiled_vmem_need(bm, cand, L8, pbytes, xbytes),
                       _dec_tiled_vmem_need(bm, cand, L8, pbytes, xbytes))
            if need <= (cap * 6) // 10:
                dk = cand
                break
        dk = min(dk, _round_up(D, 128))
    return _tiled_call(x, we_t, be, wd_t, bm=bm, dk=int(dk))


class GradiendModelPallas:
    """Stand-in for GradiendModel (relu/relu, no decoder bias, no intermediate).

    param_dtype=jnp.bfloat16 by default (halves weight HBM traffic, fast MXU
    path); pass jnp.float32 for exact f32 semantics.
    """
    # TODO(synk): named_parameters / dict gradient extraction, mask-based
    # reconstruction, intermediate=True, bias_decoder=True and non-relu
    # activations are host-side / config variants not implemented here.

    def __init__(self, input_dim, latent_dim, decoder_factor=1.0, seed=0,
                 param_dtype=jnp.bfloat16):
        self.input_dim = int(input_dim)
        self.latent_dim = int(latent_dim)
        self.avg_gradient_norm = 0.0
        self.ctr = 0

        key = jax.random.PRNGKey(seed)
        k_we, k_be, k_wd = jax.random.split(key, 3)

        # PyTorch nn.Linear default init: U(-1/sqrt(fan_in), 1/sqrt(fan_in))
        bound = 1.0 / jnp.sqrt(jnp.float32(input_dim))
        self.w_enc = jax.random.uniform(
            k_we, (latent_dim, input_dim), jnp.float32, -bound, bound)
        self.b_enc = jax.random.uniform(
            k_be, (latent_dim,), jnp.float32, -bound, bound)

        # Decoder weight re-init: U(-x, x), x = max(encoder weight) * decoder_factor
        xmax = jnp.max(self.w_enc) * decoder_factor
        self.w_dec = jax.random.uniform(
            k_wd, (input_dim, latent_dim), jnp.float32, -xmax, xmax)
        # bias_decoder=False -> no decoder bias

        # Transpose / latent padding / dtype cast hoisted out of the call path.
        self._we_t, self._be, self._wd_t = prepare_gradiend_params(
            self.w_enc, self.b_enc, self.w_dec, param_dtype)

    def __call__(self, x, **kwargs):
        decoded, grad_norm = gradiend_forward(
            x, self._we_t, self._be, self._wd_t, **kwargs)
        # Running statistic kept on-device (no forced host sync per call).
        self.avg_gradient_norm = (
            self.avg_gradient_norm * self.ctr + grad_norm) / (self.ctr + 1)
        self.ctr += 1
        return decoded


def _reference_forward(x, w_enc, b_enc, w_dec):
    enc = jnp.maximum(jnp.dot(x, w_enc.T, precision="highest") + b_enc, 0.0)
    dec = jnp.maximum(jnp.dot(enc, w_dec.T, precision="highest"), 0.0)
    return dec, jnp.sqrt(jnp.sum(x * x))


if __name__ == "__main__":
    # Case 1: f32 params, aligned shapes -> fused path, 2 batch tiles.
    B, INPUT_DIM, LATENT_DIM = 16, 256, 8
    model = GradiendModelPallas(INPUT_DIM, LATENT_DIM, decoder_factor=1.0,
                                seed=0, param_dtype=jnp.float32)
    x = jax.random.normal(jax.random.PRNGKey(0), (B, INPUT_DIM), jnp.float32)
    decoded = jax.block_until_ready(model(x))
    ref_dec, ref_norm = _reference_forward(x, model.w_enc, model.b_enc, model.w_dec)
    assert jnp.allclose(decoded, ref_dec, atol=2e-4, rtol=2e-4), "decoded mismatch"
    assert abs(float(model.avg_gradient_norm) - float(ref_norm)) < 1e-2, "norm mismatch"

    # Case 2: default bf16 params (HBM/MXU-friendly path), looser tolerance.
    model_bf = GradiendModelPallas(INPUT_DIM, LATENT_DIM, decoder_factor=1.0, seed=0)
    dec_bf = jax.block_until_ready(model_bf(x))
    assert jnp.allclose(dec_bf, ref_dec, atol=2e-2, rtol=5e-2), "bf16 decoded mismatch"
    assert abs(float(model_bf.avg_gradient_norm) - float(ref_norm)) < 1e-2, "bf16 norm mismatch"

    # Case 3: ragged B / D / latent (5, 192, 3), fused path, f32 params.
    B3, D3, L3 = 5, 192, 3
    model3 = GradiendModelPallas(D3, L3, decoder_factor=1.0, seed=1,
                                 param_dtype=jnp.float32)
    x3 = jax.random.normal(jax.random.PRNGKey(1), (B3, D3), jnp.float32)
    d3 = jax.block_until_ready(model3(x3))
    r3, n3 = _reference_forward(x3, model3.w_enc, model3.b_enc, model3.w_dec)
    assert jnp.allclose(d3, r3, atol=2e-4, rtol=2e-4), "ragged decoded mismatch"
    assert abs(float(model3.avg_gradient_norm) - float(n3)) < 1e-2, "ragged norm mismatch"

    # Case 4: forced D-tiled two-pass path (ragged last D chunk + ragged batch).
    d4, n4 = gradiend_forward(x3, model3._we_t, model3._be, model3._wd_t,
                              force_tiled=True, dk=128)
    d4, n4 = jax.block_until_ready((d4, n4))
    assert jnp.allclose(d4, r3, atol=2e-4, rtol=2e-4), "tiled decoded mismatch"
    assert abs(float(n4) - float(n3)) < 1e-2, "tiled norm mismatch"

    print("KERNEL_OK")
</pallas_src>

<mosaic_0001>
module attributes {stable_mosaic.version = 11 : i64} {
  func.func @_fused_kernel(%arg0: i32, %arg1: memref<8x256xf32, #tpu.memory_space<vmem>>, %arg2: memref<256x8xf32, #tpu.memory_space<vmem>>, %arg3: memref<1x8xf32, #tpu.memory_space<vmem>>, %arg4: memref<8x256xf32, #tpu.memory_space<vmem>>, %arg5: memref<8x256xf32, #tpu.memory_space<vmem>>, %arg6: memref<8x128xf32, #tpu.memory_space<vmem>>) attributes {dimension_semantics = [#tpu.dimension_semantics<parallel>], iteration_bounds = array<i64: 2>, scalar_prefetch = 0 : i64, scratch_operands = 0 : i64, tpu.core_type = #tpu.core_type<tc>, window_params = [{transform_indices = @transform_0, window_bounds = array<i64: 8, 256>}, {pipeline_mode = #tpu.pipeline_mode<synchronous>, transform_indices = @transform_1, window_bounds = array<i64: 256, 8>}, {pipeline_mode = #tpu.pipeline_mode<synchronous>, transform_indices = @transform_2, window_bounds = array<i64: 1, 8>}, {pipeline_mode = #tpu.pipeline_mode<synchronous>, transform_indices = @transform_3, window_bounds = array<i64: 8, 256>}, {transform_indices = @transform_4, window_bounds = array<i64: 8, 256>}, {transform_indices = @transform_5, window_bounds = array<i64: 8, 128>}]} {
    %c0 = arith.constant 0 : index
    %c0_0 = arith.constant 0 : index
    %0 = vector.load %arg1[%c0, %c0_0] : memref<8x256xf32, #tpu.memory_space<vmem>>, vector<8x256xf32>
    %c0_1 = arith.constant 0 : index
    %c0_2 = arith.constant 0 : index
    %1 = vector.load %arg2[%c0_1, %c0_2] : memref<256x8xf32, #tpu.memory_space<vmem>>, vector<256x8xf32>
    %cst = arith.constant dense<0.000000e+00> : vector<8x8xf32>
    %2 = tpu.matmul %0, %1, %cst {dimension_numbers = #tpu.dot_dimension_numbers<[1], [0], [0], [1], [0, 0, 1, 1], [], []>} : vector<8x256xf32>, vector<256x8xf32>, vector<8x8xf32> -> vector<8x8xf32>
    %c0_3 = arith.constant 0 : index
    %c0_4 = arith.constant 0 : index
    %3 = vector.load %arg3[%c0_3, %c0_4] : memref<1x8xf32, #tpu.memory_space<vmem>>, vector<1x8xf32>
    %4 = vector.broadcast %3 : vector<1x8xf32> to vector<8x8xf32>
    %5 = arith.addf %2, %4 : vector<8x8xf32>
    %cst_5 = arith.constant 0.000000e+00 : f32
    %6 = vector.broadcast %cst_5 : f32 to vector<8x8xf32>
    %7 = arith.maximumf %5, %6 : vector<8x8xf32>
    %c0_6 = arith.constant 0 : index
    %c0_7 = arith.constant 0 : index
    %8 = vector.load %arg4[%c0_6, %c0_7] : memref<8x256xf32, #tpu.memory_space<vmem>>, vector<8x256xf32>
    %cst_8 = arith.constant dense<0.000000e+00> : vector<8x256xf32>
    %9 = tpu.matmul %7, %8, %cst_8 {dimension_numbers = #tpu.dot_dimension_numbers<[1], [0], [0], [1], [0, 0, 1, 1], [], []>} : vector<8x8xf32>, vector<8x256xf32>, vector<8x256xf32> -> vector<8x256xf32>
    %cst_9 = arith.constant 0.000000e+00 : f32
    %10 = vector.broadcast %cst_9 : f32 to vector<8x256xf32>
    %11 = arith.maximumf %9, %10 : vector<8x256xf32>
    %c0_10 = arith.constant 0 : index
    %c0_11 = arith.constant 0 : index
    %12 = vector.load %arg5[%c0_10, %c0_11] : memref<8x256xf32, #tpu.memory_space<vmem>>, vector<8x256xf32>
    tpu.vector_store %arg5[%c0_10, %c0_11], %11 {strides = array<i32>} : memref<8x256xf32, #tpu.memory_space<vmem>>, vector<8x256xf32>,
    %13 = arith.mulf %0, %0 : vector<8x256xf32>
    %14 = vector.shape_cast %13 : vector<8x256xf32> to vector<1x8x256xf32>
    %cst_12 = arith.constant dense<0.000000e+00> : vector<1xf32>
    %15 = vector.multi_reduction <add>, %14, %cst_12 [1, 2] : vector<1x8x256xf32> to vector<1xf32>
    %16 = vector.shape_cast %15 : vector<1xf32> to vector<1x1x1xf32>
    %17 = vector.extract %16[0, 0, 0] : f32 from vector<1x1x1xf32>
    %18 = vector.broadcast %17 : f32 to vector<8x128xf32>
    %c0_13 = arith.constant 0 : index
    %c0_14 = arith.constant 0 : index
    %19 = vector.load %arg6[%c0_13, %c0_14] : memref<8x128xf32, #tpu.memory_space<vmem>>, vector<8x128xf32>
    tpu.vector_store %arg6[%c0_13, %c0_14], %18 {strides = array<i32>} : memref<8x128xf32, #tpu.memory_space<vmem>>, vector<8x128xf32>,
    return
  }
  func.func @transform_0(%arg0: i32) -> (i32, i32) {
    %c0_i32 = arith.constant 0 : i32
    %c0_i32_0 = arith.constant 0 : i32
    return %arg0, %c0_i32 : i32, i32
  }
  func.func @transform_1(%arg0: i32) -> (i32, i32) {
    %c0_i32 = arith.constant 0 : i32
    %c0_i32_0 = arith.constant 0 : i32
    %c0_i32_1 = arith.constant 0 : i32
    return %c0_i32, %c0_i32_0 : i32, i32
  }
  func.func @transform_2(%arg0: i32) -> (i32, i32) {
    %c0_i32 = arith.constant 0 : i32
    %c0_i32_0 = arith.constant 0 : i32
    %c0_i32_1 = arith.constant 0 : i32
    return %c0_i32, %c0_i32_0 : i32, i32
  }
  func.func @transform_3(%arg0: i32) -> (i32, i32) {
    %c0_i32 = arith.constant 0 : i32
    %c0_i32_0 = arith.constant 0 : i32
    %c0_i32_1 = arith.constant 0 : i32
    return %c0_i32, %c0_i32_0 : i32, i32
  }
  func.func @transform_4(%arg0: i32) -> (i32, i32) {
    %c0_i32 = arith.constant 0 : i32
    %c0_i32_0 = arith.constant 0 : i32
    return %arg0, %c0_i32 : i32, i32
  }
  func.func @transform_5(%arg0: i32) -> (i32, i32) {
    %c0_i32 = arith.constant 0 : i32
    %c0_i32_0 = arith.constant 0 : i32
    return %arg0, %c0_i32 : i32, i32
  }
}

</mosaic_0001>

<llo_original>
// kernel: _fused_call.1
$region0: #{_fused_call.1}
  #allocation0 [shape = 'u32[]', space=smem, size = 0x4, offset = 0x4, fixed_abs, tag = 'smem constant byte address 0x4 - core index']
  #allocation1 [shape = 'u32[144,128]{1,0:T(1,128)}', space=vmem, size = 0x12000, scoped, tag = 'internal scratch']
  %s0 = inlined_call_operand.vmem [shape: f32[16,256], index: 0, kind: input, shape index: {}]
  %s1 = inlined_call_operand.vmem [shape: f32[256,8], index: 1, kind: input, shape index: {}]
  %s2 = inlined_call_operand.vmem [shape: f32[1,8], index: 2, kind: input, shape index: {}]
  %s3 = inlined_call_operand.vmem [shape: f32[8,256], index: 3, kind: input, shape index: {}]
  %s4 = inlined_call_operand.hbm [shape: f32[16,256], index: 4, kind: output, shape index: {0}]
  %s5 = inlined_call_operand.vmem [shape: f32[16,128], index: 5, kind: output, shape index: {1}]
  %6 = xla_tuple %s4, %s5
  %s7 = sld [smem:[#allocation0]]
  $region57: #{_fused_call.1} parent=0
    _
  %s9 = ssub.s32 1, %s7
  %s10 = scalar_select 0, %s9, %s7
  $region1: #{_fused_call.1} parent=0
    #allocation2 [shape = 'u8[16384]{0}', space=vmem, size = 0x4000, scoped, tag = 'output window, operand 0']
    #allocation3 [shape = 's32[2]{0}', space=sflag, size = 0x8, scoped, tag = 'scoped memory for _fused_call.1']
    %11 = vsyncpa [#allocation3], 0
    %s12 = scalar_lea.sflag [#allocation3], 1
    %13 = vsyncpa %s12, 0
    loop: start=0, step=1, limit=4
    $region2: #{_fused_call.1} parent=1 // loop_pre_header
      _
    $region3: #{_fused_call.1} parent=1 // loop_header
      %s15 = sphi 0, %s19
      %p16 = scmp.ge.s32.totalorder %s15, 4
      %s25 = sphi 0, %s27
      %s28 = sphi 0, %s25
      %s29 = sphi 0, %s28
      %s45 = sphi 0, %s29
      %s49 = sphi 0, %s49
      %s51 = sphi 0, %s49
      %s52 = sphi 0, %s51
      %s66 = sphi 0, %s52
      %s70 = sphi 0, %s70
      %s72 = sphi 0, %s70
      %s73 = sphi 0, %s72
      %s87 = sphi 0, %s73
      %s91 = sphi 0, %s91
      %s93 = sphi 0, %s91
      %s94 = sphi 0, %s93
      %s108 = sphi 0, %s94
      %s114 = sphi 0, %s116
      %s117 = sphi 0, %s114
      %s118 = sphi 0, %s117
      %s134 = sphi 0, %s118
      %s140 = sphi 0, %s142
      %s143 = sphi 0, %s140
      %s144 = sphi 0, %s143
      %s160 = sphi 0, %s144
    $region4: #{_fused_call.1} parent=1 // loop_header_branch
      %18 = sbr.rel (%p16) target = $region8
    $region5: #{_fused_call.1} parent=1 // loop_body
      %s20 = ssub.s32 %s15, 1
      %s21 = ssub.s32 %s15, 2
      %s22 = sadd.s32 %s15, 1
      %s23 = ssub.s32 %s15, %s22
      %p24 = scmp.eq.s32.totalorder %s23, 0
      %s26 = sadd.s32 %s25, 1
      %s27 = scalar_select %p24, %s25, %s26
      %p30 = pneg %p24
      %p31 = scmp.eq.s32.totalorder %s15, 1
      %p32 = por %p30, %p31
      %p33 = scmp.ne.s32.totalorder %s25, %s28
      %p34 = scmp.eq.s32.totalorder %s15, 0
      %p35 = por %p33, %p34
      %p36 = scmp.ne.s32.totalorder %s25, %s28
      %p37 = scmp.eq.s32.totalorder %s20, 1
      %p38 = por %p36, %p37
      %p39 = scmp.ne.s32.totalorder %s28, %s29
      %p40 = scmp.eq.s32.totalorder %s20, 0
      %p41 = por %p39, %p40
      %p42 = scmp.ne.s32.totalorder %s28, %s29
      %p43 = scmp.eq.s32.totalorder %s21, 1
      %p44 = por %p42, %p43
      %p46 = scmp.ne.s32.totalorder %s29, %s45
      %p47 = scmp.eq.s32.totalorder %s21, 0
      %p48 = por %p46, %p47
      %s50 = sadd.s32 %s49, 1
      %p53 = scmp.eq.s32.totalorder %s15, 1
      %p54 = scmp.ne.s32.totalorder %s49, %s51
      %p55 = scmp.eq.s32.totalorder %s15, 0
      %p56 = por %p54, %p55
      %p57 = scmp.ne.s32.totalorder %s49, %s51
      %p58 = scmp.eq.s32.totalorder %s20, 1
      %p59 = por %p57, %p58
      %p60 = scmp.ne.s32.totalorder %s51, %s52
      %p61 = scmp.eq.s32.totalorder %s20, 0
      %p62 = por %p60, %p61
      %p63 = scmp.ne.s32.totalorder %s51, %s52
      %p64 = scmp.eq.s32.totalorder %s21, 1
      %p65 = por %p63, %p64
      %p67 = scmp.ne.s32.totalorder %s52, %s66
      %p68 = scmp.eq.s32.totalorder %s21, 0
      %p69 = por %p67, %p68
      %s71 = sadd.s32 %s70, 1
      %p74 = scmp.eq.s32.totalorder %s15, 1
      %p75 = scmp.ne.s32.totalorder %s70, %s72
      %p76 = scmp.eq.s32.totalorder %s15, 0
      %p77 = por %p75, %p76
      %p78 = scmp.ne.s32.totalorder %s70, %s72
      %p79 = scmp.eq.s32.totalorder %s20, 1
      %p80 = por %p78, %p79
      %p81 = scmp.ne.s32.totalorder %s72, %s73
      %p82 = scmp.eq.s32.totalorder %s20, 0
      %p83 = por %p81, %p82
      %p84 = scmp.ne.s32.totalorder %s72, %s73
      %p85 = scmp.eq.s32.totalorder %s21, 1
      %p86 = por %p84, %p85
      %p88 = scmp.ne.s32.totalorder %s73, %s87
      %p89 = scmp.eq.s32.totalorder %s21, 0
      %p90 = por %p88, %p89
      %s92 = sadd.s32 %s91, 1
      %p95 = scmp.eq.s32.totalorder %s15, 1
      %p96 = scmp.ne.s32.totalorder %s91, %s93
      %p97 = scmp.eq.s32.totalorder %s15, 0
      %p98 = por %p96, %p97
      %p99 = scmp.ne.s32.totalorder %s91, %s93
      %p100 = scmp.eq.s32.totalorder %s20, 1
      %p101 = por %p99, %p100
      %p102 = scmp.ne.s32.totalorder %s93, %s94
      %p103 = scmp.eq.s32.totalorder %s20, 0
      %p104 = por %p102, %p103
      %p105 = scmp.ne.s32.totalorder %s93, %s94
      %p106 = scmp.eq.s32.totalorder %s21, 1
      %p107 = por %p105, %p106
      %p109 = scmp.ne.s32.totalorder %s94, %s108
      %p110 = scmp.eq.s32.totalorder %s21, 0
      %p111 = por %p109, %p110
      %s112 = ssub.s32 %s15, %s22
      %p113 = scmp.eq.s32.totalorder %s112, 0
      %s115 = sadd.s32 %s114, 1
      %s116 = scalar_select %p113, %s114, %s115
      %p119 = pneg %p113
      %p120 = scmp.eq.s32.totalorder %s15, 1
      %p121 = por %p119, %p120
      %p122 = scmp.ne.s32.totalorder %s114, %s117
      %p123 = scmp.eq.s32.totalorder %s15, 0
      %p124 = por %p122, %p123
      %p125 = scmp.ne.s32.totalorder %s114, %s117
      %p126 = scmp.eq.s32.totalorder %s20, 1
      %p127 = por %p125, %p126
      %p128 = scmp.ne.s32.totalorder %s117, %s118
      %p129 = scmp.eq.s32.totalorder %s20, 0
      %p130 = por %p128, %p129
      %p131 = scmp.ne.s32.totalorder %s117, %s118
      %p132 = scmp.eq.s32.totalorder %s21, 1
      %p133 = por %p131, %p132
      %p135 = scmp.ne.s32.totalorder %s118, %s134
      %p136 = scmp.eq.s32.totalorder %s21, 0
      %p137 = por %p135, %p136
      %s138 = ssub.s32 %s15, %s22
      %p139 = scmp.eq.s32.totalorder %s138, 0
      %s141 = sadd.s32 %s140, 1
      %s142 = scalar_select %p139, %s140, %s141
      %p145 = pneg %p139
      %p146 = scmp.eq.s32.totalorder %s15, 1
      %p147 = por %p145, %p146
      %p148 = scmp.ne.s32.totalorder %s140, %s143
      %p149 = scmp.eq.s32.totalorder %s15, 0
      %p150 = por %p148, %p149
      %p151 = scmp.ne.s32.totalorder %s140, %s143
      %p152 = scmp.eq.s32.totalorder %s20, 1
      %p153 = por %p151, %p152
      %p154 = scmp.ne.s32.totalorder %s143, %s144
      %p155 = scmp.eq.s32.totalorder %s20, 0
      %p156 = por %p154, %p155
      %p157 = scmp.ne.s32.totalorder %s143, %s144
      %p158 = scmp.eq.s32.totalorder %s21, 1
      %p159 = por %p157, %p158
      %p161 = scmp.ne.s32.totalorder %s144, %s160
      %p162 = scmp.eq.s32.totalorder %s21, 0
      %p163 = por %p161, %p162
      %p164 = scmp.le.s32.totalorder 1, %s15
      %p165 = scmp.lt.s32.totalorder %s15, 3
      %p166 = pnand %p164, %p165
      %p167 = pneg %p166
      // Predicated region
      $region9: #{_fused_call.1} parent=5 // pred_check
        _
      $region10: #{_fused_call.1} parent=5 // pred_check_branch
        %169 = sbr.rel (%p166) target = $region12
      $region11: #{_fused_call.1} parent=5 // pred_region
        %s170 = ssub.s32 %s15, 1
        // Predicated region
        $region13: #{_fused_call.1} parent=11 // pred_check
          %p171 = pneg %p62
        $region14: #{_fused_call.1} parent=11 // pred_check_branch
          %173 = sbr.rel (%p171) target = $region16
        $region15: #{_fused_call.1} parent=11 // pred_region
          _
        $region16: #{_fused_call.1} parent=11 // pred_fallthru
          _
        // Predicated region
        $region17: #{_fused_call.1} parent=11 // pred_check
          %p174 = pneg %p83
        $region18: #{_fused_call.1} parent=11 // pred_check_branch
          %176 = sbr.rel (%p174) target = $region20
        $region19: #{_fused_call.1} parent=11 // pred_region
          _
        $region20: #{_fused_call.1} parent=11 // pred_fallthru
          _
        // Predicated region
        $region21: #{_fused_call.1} parent=11 // pred_check
          %p177 = pneg %p104
        $region22: #{_fused_call.1} parent=11 // pred_check_branch
          %179 = sbr.rel (%p177) target = $region24
        $region23: #{_fused_call.1} parent=11 // pred_region
          _
        $region24: #{_fused_call.1} parent=11 // pred_fallthru
          _
      $region12: #{_fused_call.1} parent=5 // pred_fallthru
        _
      %p180 = scmp.lt.s32.totalorder %s15, 2
      // Predicated region
      $region25: #{_fused_call.1} parent=5 // pred_check
        %p181 = pneg %p180
      $region26: #{_fused_call.1} parent=5 // pred_check_branch
        %183 = sbr.rel (%p181) target = $region28
      $region27: #{_fused_call.1} parent=5 // pred_region
        // Predicated region
        $region29: #{_fused_call.1} parent=27 // pred_check
          %p184 = pneg %p35
        $region30: #{_fused_call.1} parent=27 // pred_check_branch
          %186 = sbr.rel (%p184) target = $region32
        $region31: #{_fused_call.1} parent=27 // pred_region
          %p187 = scmp.lt.s32.totalorder %s15, 1
          %s188 = scalar_select %p187, %s15, 1
          %s189 = smul.addr %s188, 2
          %s190 = smul.addr %s189, 8
          %s191 = scalar_lea.vmem %s0, %s190
        $region32: #{_fused_call.1} parent=27 // pred_fallthru
          _
      $region28: #{_fused_call.1} parent=5 // pred_fallthru
        _
      %p192 = scmp.le.s32.totalorder 1, %s15
      %p193 = scmp.lt.s32.totalorder %s15, 3
      %p194 = pnand %p192, %p193
      %p195 = pneg %p194
      // Predicated region
      $region33: #{_fused_call.1} parent=5 // pred_check
        _
      $region34: #{_fused_call.1} parent=5 // pred_check_branch
        %197 = sbr.rel (%p194) target = $region36
      $region35: #{_fused_call.1} parent=5 // pred_region
        %s198 = ssub.s32 %s15, 1
        %p199 = scmp.lt.s32.totalorder %s20, 1
        %s200 = scalar_select %p199, %s20, 1
        %s201 = smul.addr %s200, 2
        %s202 = smul.addr %s201, 8
        %s203 = scalar_lea.vmem %s0, %s202
        %p204 = pneg %p41
        %p205 = pneg %p38
        %p206 = pneg %p62
        %p207 = pneg %p59
        %p208 = pneg %p83
        %p209 = pneg %p80
        %p210 = pneg %p104
        %p211 = pneg %p101
        %p212 = pneg %p130
        %p213 = pneg %p127
        %s214 = sand.u32 %s117, 1
        %s215 = scalar_lea.sflag [#allocation3], %s214
        %s216 = sand.u32 %s117, 1
        %s217 = smul.addr %s216, 16
        %s218 = scalar_lea.vmem [#allocation2], %s217
        %p219 = pneg %p156
        %p220 = pneg %p153
        %p221 = scmp.lt.s32.totalorder %s20, 1
        %s222 = scalar_select %p221, %s20, 1
        %s223 = smul.addr %s222, 8
        %s224 = scalar_lea.vmem %s5, %s223
        %p225 = scmp.lt.s32.totalorder %s20, 1
        %s226 = scalar_select %p225, %s20, 1
        %s227 = smul.addr %s226, 2
        %s228 = smul.addr %s227, 8
        %s229 = scalar_lea.vmem %s0, %s228
        %p230 = scmp.lt.s32.totalorder %s20, 1
        %s231 = scalar_select %p230, %s20, 1
        %s232 = smul.addr %s231, 8
        %s233 = scalar_lea.vmem %s5, %s232
        %v234 = vld [vmem:[%s229] sm:$0xff]
        %v235 = vld [vmem:[%s229 + $0x8] sm:$0xff]
        %v236 = vld [vmem:[%s1] sm:$0xff]
        %v237 = vld [vmem:[%s1 + $0x8] sm:$0xff]
        %v238 = vld [vmem:[%s1 + $0x10] sm:$0xff]
        %v239 = vld [vmem:[%s1 + $0x18] sm:$0xff]
        %v240 = vld [vmem:[%s1 + $0x20] sm:$0xff]
        %v241 = vld [vmem:[%s1 + $0x28] sm:$0xff]
        %v242 = vld [vmem:[%s1 + $0x30] sm:$0xff]
        %v243 = vld [vmem:[%s1 + $0x38] sm:$0xff]
        %v244 = vld [vmem:[%s1 + $0x40] sm:$0xff]
        %v245 = vld [vmem:[%s1 + $0x48] sm:$0xff]
        %v246 = vld [vmem:[%s1 + $0x50] sm:$0xff]
        %v247 = vld [vmem:[%s1 + $0x58] sm:$0xff]
        %v248 = vld [vmem:[%s1 + $0x60] sm:$0xff]
        %v249 = vld [vmem:[%s1 + $0x68] sm:$0xff]
        %v250 = vld [vmem:[%s1 + $0x70] sm:$0xff]
        %v251 = vld [vmem:[%s1 + $0x78] sm:$0xff]
        %v252 = vld [vmem:[%s1 + $0x80] sm:$0xff]
        %v253 = vld [vmem:[%s1 + $0x88] sm:$0xff]
        %v254 = vld [vmem:[%s1 + $0x90] sm:$0xff]
        %v255 = vld [vmem:[%s1 + $0x98] sm:$0xff]
        %v256 = vld [vmem:[%s1 + $0xa0] sm:$0xff]
        %v257 = vld [vmem:[%s1 + $0xa8] sm:$0xff]
        %v258 = vld [vmem:[%s1 + $0xb0] sm:$0xff]
        %v259 = vld [vmem:[%s1 + $0xb8] sm:$0xff]
        %v260 = vld [vmem:[%s1 + $0xc0] sm:$0xff]
        %v261 = vld [vmem:[%s1 + $0xc8] sm:$0xff]
        %v262 = vld [vmem:[%s1 + $0xd0] sm:$0xff]
        %v263 = vld [vmem:[%s1 + $0xd8] sm:$0xff]
        %v264 = vld [vmem:[%s1 + $0xe0] sm:$0xff]
        %v265 = vld [vmem:[%s1 + $0xe8] sm:$0xff]
        %v266 = vld [vmem:[%s1 + $0xf0] sm:$0xff]
        %v267 = vld [vmem:[%s1 + $0xf8] sm:$0xff]
        %v268 = vld [vmem:[%s2] sm:$0x1]
        %v270 = vlaneseq
        %v271 = vshrl.u32 %v270, 7
        %v272 = vsub.s32 0, %v271
        %v273 = vrot.slane %v268, %v272
        %275 = vmatprep.subr.mxu0 0.0
        %276 = vmatpush1.msra.mxu0 %v236
        %277 = vmatprep.subr.mxu0 0.0
        %278 = vmatpush1.msra.mxu0 %v237
        %279 = vmatprep.subr.mxu0 0.0
        %280 = vmatpush1.msra.mxu0 %v238
        %281 = vmatprep.subr.mxu0 0.0
        %282 = vmatpush1.msra.mxu0 %v239
        %283 = vmatprep.subr.mxu0 0.0
        %284 = vmatpush1.msra.mxu0 %v240
        %285 = vmatprep.subr.mxu0 0.0
        %286 = vmatpush1.msra.mxu0 %v241
        %287 = vmatprep.subr.mxu0 0.0
        %288 = vmatpush1.msra.mxu0 %v242
        %289 = vmatprep.subr.mxu0 0.0
        %290 = vmatpush1.msra.mxu0 %v243
        %291 = vmatprep.subr.mxu0 0.0
        %292 = vmatpush1.msra.mxu0 %v244
        %293 = vmatprep.subr.mxu0 0.0
        %294 = vmatpush1.msra.mxu0 %v245
        %295 = vmatprep.subr.mxu0 0.0
        %296 = vmatpush1.msra.mxu0 %v246
        %297 = vmatprep.subr.mxu0 0.0
        %298 = vmatpush1.msra.mxu0 %v247
        %299 = vmatprep.subr.mxu0 0.0
        %300 = vmatpush1.msra.mxu0 %v248
        %301 = vmatprep.subr.mxu0 0.0
        %302 = vmatpush1.msra.mxu0 %v249
        %303 = vmatprep.subr.mxu0 0.0
        %304 = vmatpush1.msra.mxu0 %v250
        %305 = vmatprep.subr.mxu0 0.0
        %306 = vmatpush1.msra.mxu0 %v251
        %307 = vmatprep.subr.mxu0 0.0
        %308 = vmatpush1.msra.mxu0 %v252
        %309 = vmatprep.subr.mxu0 0.0
        %310 = vmatpush1.msra.mxu0 %v253
        %311 = vmatprep.subr.mxu0 0.0
        %312 = vmatpush1.msra.mxu0 %v254
        %313 = vmatprep.subr.mxu0 0.0
        %314 = vmatpush1.msra.mxu0 %v255
        %315 = vmatprep.subr.mxu0 0.0
        %316 = vmatpush1.msra.mxu0 %v256
        %317 = vmatprep.subr.mxu0 0.0
        %318 = vmatpush1.msra.mxu0 %v257
        %319 = vmatprep.subr.mxu0 0.0
        %320 = vmatpush1.msra.mxu0 %v258
        %321 = vmatprep.subr.mxu0 0.0
        %322 = vmatpush1.msra.mxu0 %v259
        %323 = vmatprep.subr.mxu0 0.0
        %324 = vmatpush1.msra.mxu0 %v260
        %325 = vmatprep.subr.mxu0 0.0
        %326 = vmatpush1.msra.mxu0 %v261
        %327 = vmatprep.subr.mxu0 0.0
        %328 = vmatpush1.msra.mxu0 %v262
        %329 = vmatprep.subr.mxu0 0.0
        %330 = vmatpush1.msra.mxu0 %v263
        %331 = vmatprep.subr.mxu0 0.0
        %332 = vmatpush1.msra.mxu0 %v264
        %333 = vmatprep.subr.mxu0 0.0
        %334 = vmatpush1.msra.mxu0 %v265
        %335 = vmatprep.subr.mxu0 0.0
        %336 = vmatpush1.msra.mxu0 %v266
        %337 = vmatprep.subr.mxu0 0.0
        %338 = vmatpush1.msra.mxu0 %v267
        %339 = vmatprep.mubr.f32.mxu0 %v235
        %340 = vmatmul.mubr.f32.gmra.mrb[0].mxu0 %v234
        %v341 = vpop.f32.mrb[0].mxu0
        %v342 = vadd.f32 %v273, %v341
        %v343 = vpop.f32.mrb[0].mxu0
        %344 = vdwg.mxu0
        %v345 = vmax.f32 %v342, 0.0
        %v346 = vld [vmem:[%s3] sm:$0xff]
        %v347 = vld [vmem:[%s3 + $0x8] sm:$0xff]
        %vm348 = vcmask 64512
        %v350 = vsel %vm348, %v345, 0
        %352 = vmatprep.subr.mxu0 %v347
        %353 = vmatpush1.msra.mxu0 %v346
        %354 = vmatprep.subr.mxu0 0.0
        %355 = vmatpush1.msra.mxu0 0.0
        %356 = vmatprep.subr.mxu0 0.0
        %357 = vmatpush1.msra.mxu0 0.0
        %358 = vmatprep.subr.mxu0 0.0
        %359 = vmatpush1.msra.mxu0 0.0
        %360 = vmatprep.subr.mxu0 0.0
        %361 = vmatpush1.msra.mxu0 0.0
        %362 = vmatprep.subr.mxu0 0.0
        %363 = vmatpush1.msra.mxu0 0.0
        %364 = vmatprep.subr.mxu0 0.0
        %365 = vmatpush1.msra.mxu0 0.0
        %366 = vmatprep.subr.mxu0 0.0
        %367 = vmatpush1.msra.mxu0 0.0
        %368 = vmatprep.subr.mxu0 0.0
        %369 = vmatpush1.msra.mxu0 0.0
        %370 = vmatprep.subr.mxu0 0.0
        %371 = vmatpush1.msra.mxu0 0.0
        %372 = vmatprep.subr.mxu0 0.0
        %373 = vmatpush1.msra.mxu0 0.0
        %374 = vmatprep.subr.mxu0 0.0
        %375 = vmatpush1.msra.mxu0 0.0
        %376 = vmatprep.subr.mxu0 0.0
        %377 = vmatpush1.msra.mxu0 0.0
        %378 = vmatprep.subr.mxu0 0.0
        %379 = vmatpush1.msra.mxu0 0.0
        %380 = vmatprep.subr.mxu0 0.0
        %381 = vmatpush1.msra.mxu0 0.0
        %382 = vmatprep.subr.mxu0 0.0
        %383 = vmatpush1.msra.mxu0 0.0
        %384 = vmatprep.subr.mxu0 0.0
        %385 = vmatpush1.msra.mxu0 0.0
        %386 = vmatprep.subr.mxu0 0.0
        %387 = vmatpush1.msra.mxu0 0.0
        %388 = vmatprep.subr.mxu0 0.0
        %389 = vmatpush1.msra.mxu0 0.0
        %390 = vmatprep.subr.mxu0 0.0
        %391 = vmatpush1.msra.mxu0 0.0
        %392 = vmatprep.subr.mxu0 0.0
        %393 = vmatpush1.msra.mxu0 0.0
        %394 = vmatprep.subr.mxu0 0.0
        %395 = vmatpush1.msra.mxu0 0.0
        %396 = vmatprep.subr.mxu0 0.0
        %397 = vmatpush1.msra.mxu0 0.0
        %398 = vmatprep.subr.mxu0 0.0
        %399 = vmatpush1.msra.mxu0 0.0
        %400 = vmatprep.subr.mxu0 0.0
        %401 = vmatpush1.msra.mxu0 0.0
        %402 = vmatprep.subr.mxu0 0.0
        %403 = vmatpush1.msra.mxu0 0.0
        %404 = vmatprep.subr.mxu0 0.0
        %405 = vmatpush1.msra.mxu0 0.0
        %406 = vmatprep.subr.mxu0 0.0
        %407 = vmatpush1.msra.mxu0 0.0
        %408 = vmatprep.subr.mxu0 0.0
        %409 = vmatpush1.msra.mxu0 0.0
        %410 = vmatprep.subr.mxu0 0.0
        %411 = vmatpush1.msra.mxu0 0.0
        %412 = vmatprep.subr.mxu0 0.0
        %413 = vmatpush1.msra.mxu0 0.0
        %414 = vmatprep.subr.mxu0 0.0
        %415 = vmatpush1.msra.mxu0 0.0
        %416 = vmatprep.mubr.f32.mxu0 0.0
        %417 = vmatmul.mubr.f32.gmra.mrb[0].mxu0 %v350
        %v418 = vpop.f32.mrb[0].mxu0
        %v419 = vadd.f32 0.0, %v418
        %v420 = vpop.f32.mrb[0].mxu0
        %v421 = vadd.f32 0.0, %v420
        %422 = vdwg.mxu0
        %v423 = vmax.f32 %v419, 0.0
        %v424 = vmax.f32 %v421, 0.0
        %425 = vst [vmem:[%s218] sm:$0xff] %v423
        %426 = vst [vmem:[%s218 + $0x8] sm:$0xff] %v424
        %v427 = vmul.f32 %v234, %v234
        %v428 = vmul.f32 %v235, %v235
        %v429 = vadd.f32 %v427, %v428
        %430 = vadd.xlane.f32.xlu0 %v429
        %v431 = vpop.xlane.xlu0 %430
        %v432 = vrot.slane %v431, 4
        %v433 = vadd.f32 %v431, %v432
        %v434 = vrot.slane %v433, 2
        %v435 = vadd.f32 %v433, %v434
        %v436 = vrot.slane %v435, 1
        %v437 = vadd.f32 %v435, %v436
        %s438 = vtos %v437
        %v439 = vstv %s438
        %440 = vst [vmem:[%s233] sm:$0xff] %v439
        %s441 = sand.u32 %s117, 1
        %s442 = scalar_lea.sflag [#allocation3], %s441
        %s443 = sand.u32 %s117, 1
        %s444 = smul.addr %s443, 16
        %s445 = scalar_lea.vmem [#allocation2], %s444
        %p446 = scmp.lt.s32.totalorder %s20, 1
        %s447 = scalar_select %p446, %s20, 1
        %s448 = smul.addr %s447, 8
        %s449 = scalar_lea.vmem %s5, %s448
        // Predicated region
        $region37: #{_fused_call.1} parent=35 // pred_check
          %p450 = pneg %p127
        $region38: #{_fused_call.1} parent=35 // pred_check_branch
          %452 = sbr.rel (%p450) target = $region40
        $region39: #{_fused_call.1} parent=35 // pred_region
          %s454 = ssub.s32 256, 256
          %455 = vsyncadd %s442, %s454
          %s456 = smul.addr %s20, 2
          %s457 = smul.addr %s456, 128
          %s458 = scalar_lea.hbm %s4, %s457
          %s460 = sshll.u32 %s445, 4
          %s461 = int_to_ptr.vmem [resolvable:$true] %s460
          %463 = dma.vmem_to_hbm [thread:$0]  %s461, 256, %s458, %s442
        $region40: #{_fused_call.1} parent=35 // pred_fallthru
          _
        // Predicated region
        $region41: #{_fused_call.1} parent=35 // pred_check
          %p464 = pneg %p153
        $region42: #{_fused_call.1} parent=35 // pred_check_branch
          %466 = sbr.rel (%p464) target = $region44
        $region43: #{_fused_call.1} parent=35 // pred_region
          _
        $region44: #{_fused_call.1} parent=35 // pred_fallthru
          _
      $region36: #{_fused_call.1} parent=5 // pred_fallthru
        _
      %p467 = scmp.le.s32.totalorder 2, %s15
      // Predicated region
      $region45: #{_fused_call.1} parent=5 // pred_check
        %p468 = pneg %p467
      $region46: #{_fused_call.1} parent=5 // pred_check_branch
        %470 = sbr.rel (%p468) target = $region48
      $region47: #{_fused_call.1} parent=5 // pred_region
        %s471 = ssub.s32 %s15, 2
        // Predicated region
        $region49: #{_fused_call.1} parent=47 // pred_check
          %p472 = pneg %p133
        $region50: #{_fused_call.1} parent=47 // pred_check_branch
          %474 = sbr.rel (%p472) target = $region52
        $region51: #{_fused_call.1} parent=47 // pred_region
          %s475 = sand.u32 %s118, 1
          %s476 = scalar_lea.sflag [#allocation3], %s475
          %s477 = sand.u32 %s118, 1
          %s478 = smul.addr %s477, 16
          %s479 = scalar_lea.vmem [#allocation2], %s478
          %480 = dma.done %s476, 256
        $region52: #{_fused_call.1} parent=47 // pred_fallthru
          _
        // Predicated region
        $region53: #{_fused_call.1} parent=47 // pred_check
          %p481 = pneg %p159
        $region54: #{_fused_call.1} parent=47 // pred_check_branch
          %483 = sbr.rel (%p481) target = $region56
        $region55: #{_fused_call.1} parent=47 // pred_region
          %p484 = scmp.lt.s32.totalorder %s21, 1
          %s485 = scalar_select %p484, %s21, 1
          %s486 = smul.addr %s485, 8
          %s487 = scalar_lea.vmem %s5, %s486
        $region56: #{_fused_call.1} parent=47 // pred_fallthru
          _
      $region48: #{_fused_call.1} parent=5 // pred_fallthru
        _
    $region6: #{_fused_call.1} parent=1 // loop_footer
      %s19 = sadd.s32 1, %s15
    $region7: #{_fused_call.1} parent=1 // loop_footer_branch
      %14 = sbr.rel target = $region3
    $region8: #{_fused_call.1} parent=1 // loop_exit
      _
    %488 = vsyncpa [#allocation3], 1
    %s489 = scalar_lea.sflag [#allocation3], 1
    %490 = vsyncpa %s489, 1

</llo_original>
